<compile_context>
chip_gen: v5e
topology: v5e:2x2
jax: 0.10.0
libtpu: 0.0.40
codegen_flags: <defaults>
</compile_context>

<pallas_src>
import functools

import jax
import jax.numpy as jnp
from jax import lax
from jax.experimental import pallas as pl
from jax.experimental.pallas import tpu as pltpu

NEG_INF = -1e9  # self.shared.neg_inf (finite large-negative, per the mask formula)


def _self_attention_kernel(x_ref, w_ref, o_ref, *, mxu_dtype):
    # x_ref: (Bt, L, H) block of the batch; w_ref: (H, H); o_ref: (Bt, L, H).
    x_f32 = x_ref[...].astype(jnp.float32)          # (Bt, L, H)
    bt, L, H = x_f32.shape
    x_mx = x_f32.astype(mxu_dtype)                  # MXU operand copy
    w_mx = w_ref[...].astype(mxu_dtype)             # already mxu_dtype from wrapper

    # ---- x @ W on the fused (Bt*L, H) slab: one MXU matmul for all batches ----
    xw = jnp.dot(
        x_mx.reshape(bt * L, H), w_mx,
        preferred_element_type=jnp.float32,
    ).reshape(bt, L, H)                             # (Bt, L, H), f32 accum

    # ---- scores[b,i,j] = xw[b,i,:] . x[b,j,:]  (contract H on both operands;
    #      no explicit transpose is materialized) ----
    scores = jnp.einsum(
        "bih,bjh->bij", xw.astype(mxu_dtype), x_mx,
        preferred_element_type=jnp.float32,
    )                                               # (Bt, L, L), f32

    # ---- masked_fill_diagonal: identical to neg_inf*eye + (1-eye)*scores ----
    rows = lax.broadcasted_iota(jnp.int32, (L, L), 0)
    cols = lax.broadcasted_iota(jnp.int32, (L, L), 1)
    diag = (rows == cols)[None, :, :]               # (1, L, L), broadcasts over Bt
    scores = jnp.where(diag, jnp.float32(NEG_INF), scores)

    # ---- stable softmax over keys (axis 2); f32 on VPU, reciprocal on EUP ----
    m = jnp.max(scores, axis=-1, keepdims=True)
    e = jnp.exp(scores - m)
    p = e * pl.reciprocal(jnp.sum(e, axis=-1, keepdims=True), approx=True)

    # ---- agg = p.bmm(x) ----
    agg = jnp.einsum(
        "bij,bjh->bih", p.astype(mxu_dtype), x_mx,
        preferred_element_type=jnp.float32,
    )                                               # (Bt, L, H), f32
    o_ref[...] = agg.astype(o_ref.dtype)


def _pick_block_b(B, L, H, vmem_budget_bytes=8 * 1024 * 1024):
    """Largest divisor of B whose per-step VMEM footprint stays under budget."""
    # Rough f32 footprint per batch element: double-buffered x + out blocks and
    # the (L, L) scores/exp/p intermediates.
    per_b = (4 * L * H + 3 * L * L) * 4
    bt = max(1, min(B, vmem_budget_bytes // max(per_b, 1)))
    while B % bt:
        bt -= 1
    return bt


def self_attention(x, w, *, block_b=None, mxu_dtype=jnp.bfloat16):
    """x: (B, L, H) float32, w: (H, H) float32 -> (B, L, H) float32.

    mxu_dtype controls matmul-operand precision (accumulation is always f32).
    Pass mxu_dtype=jnp.float32 for bit-level agreement with a pure-f32 reference.
    """
    B, L, H = x.shape
    if block_b is None:
        block_b = _pick_block_b(B, L, H)
    assert B % block_b == 0, "block_b must divide B"
    grid = (B // block_b,)

    # Weight is cast once in the wrapper (halves its DMA bytes / VMEM when bf16).
    w_in = w.astype(mxu_dtype)
    kernel = functools.partial(_self_attention_kernel, mxu_dtype=mxu_dtype)

    # TODO(synk): for large L, tile keys with an online-softmax (flash) loop so
    # the (L, L) f32 scores slab is never fully resident (needed for v7x 64 MiB
    # VMEM); at these shapes the whole-sequence block is the right choice.
    # TODO(synk): with H=32 the lane dimension is only 25% occupied; a wrapper
    # repack to a lane-dense (..., k*H) view would help the store path further.
    return pl.pallas_call(
        kernel,
        out_shape=jax.ShapeDtypeStruct((B, L, H), jnp.float32),
        grid_spec=pltpu.PrefetchScalarGridSpec(
            num_scalar_prefetch=0,
            grid=grid,
            in_specs=[
                pl.BlockSpec((block_b, L, H), lambda b: (b, 0, 0)),
                pl.BlockSpec((H, H), lambda b: (0, 0)),
            ],
            out_specs=pl.BlockSpec((block_b, L, H), lambda b: (b, 0, 0)),
        ),
        compiler_params=pltpu.CompilerParams(
            dimension_semantics=("parallel",),
        ),
    )(x, w_in)


def _reference(x, w, *, mxu_dtype=jnp.float32):
    # Pure-JAX reference of the same forward pass, with the same matmul-operand
    # precision as the kernel (f32 accumulation), for a tight correctness check.
    xb = x.astype(mxu_dtype)
    wb = w.astype(mxu_dtype)
    xw = jnp.einsum("blh,hk->blk", xb, wb, preferred_element_type=jnp.float32)
    scores = jnp.einsum("bih,bjh->bij", xw.astype(mxu_dtype), xb,
                        preferred_element_type=jnp.float32)
    L = x.shape[1]
    eye = jnp.eye(L, dtype=bool)[None]
    scores = jnp.where(eye, NEG_INF, scores)
    p = jax.nn.softmax(scores, axis=2)
    return jnp.einsum("bij,bjh->bih", p.astype(mxu_dtype), xb,
                      preferred_element_type=jnp.float32)


if __name__ == "__main__":
    key = jax.random.PRNGKey(0)
    kx, kw = jax.random.split(key)

    B, L, H = 2, 8, 32  # batch, seq, hidden_size
    x = jax.random.normal(kx, (B, L, H), dtype=jnp.float32)
    # Deterministic bilinear weight init (BilinearProd weight, shape (H, H)).
    w = jax.random.normal(kw, (H, H), dtype=jnp.float32) * (1.0 / jnp.sqrt(H))

    out = jax.block_until_ready(self_attention(x, w))

    ref = _reference(x, w, mxu_dtype=jnp.bfloat16)
    assert out.shape == (B, L, H)
    assert out.dtype == jnp.float32
    # bf16 MXU operands / f32 accumulation on both sides; tolerance absorbs
    # accumulation-order and approx-reciprocal differences.
    assert jnp.allclose(out, ref, atol=2e-2, rtol=2e-2), "mismatch vs reference"

    # TODO(synk): 'linear'/'trilinear' prod types and the 'query' mask depend on
    # undefined LinearProd/TrilinearProd/shared.query_mask; only the
    # bilinear + diagonal-mask path is implemented here.
    print("KERNEL_OK")
</pallas_src>

<mosaic_0001>
module attributes {stable_mosaic.version = 11 : i64} {
  func.func @_self_attention_kernel(%arg0: i32, %arg1: memref<2x8x32xf32, #tpu.memory_space<vmem>>, %arg2: memref<32x32xbf16, #tpu.memory_space<vmem>>, %arg3: memref<2x8x32xf32, #tpu.memory_space<vmem>>) attributes {dimension_semantics = [#tpu.dimension_semantics<parallel>], iteration_bounds = array<i64: 1>, scalar_prefetch = 0 : i64, scratch_operands = 0 : i64, tpu.core_type = #tpu.core_type<tc>, window_params = [{transform_indices = @transform_0, window_bounds = array<i64: 2, 8, 32>}, {pipeline_mode = #tpu.pipeline_mode<synchronous>, transform_indices = @transform_1, window_bounds = array<i64: 32, 32>}, {transform_indices = @transform_2, window_bounds = array<i64: 2, 8, 32>}]} {
    %c0 = arith.constant 0 : index
    %c0_0 = arith.constant 0 : index
    %c0_1 = arith.constant 0 : index
    %0 = vector.load %arg1[%c0, %c0_0, %c0_1] : memref<2x8x32xf32, #tpu.memory_space<vmem>>, vector<2x8x32xf32>
    %1 = arith.truncf %0 : vector<2x8x32xf32> to vector<2x8x32xbf16>
    %c0_2 = arith.constant 0 : index
    %c0_3 = arith.constant 0 : index
    %2 = vector.load %arg2[%c0_2, %c0_3] : memref<32x32xbf16, #tpu.memory_space<vmem>>, vector<32x32xbf16>
    %3 = vector.shape_cast %1 : vector<2x8x32xbf16> to vector<16x32xbf16>
    %cst = arith.constant dense<0.000000e+00> : vector<16x32xf32>
    %4 = tpu.matmul %3, %2, %cst {dimension_numbers = #tpu.dot_dimension_numbers<[1], [0], [0], [1], [0, 0, 1, 1], [], []>} : vector<16x32xbf16>, vector<32x32xbf16>, vector<16x32xf32> -> vector<16x32xf32>
    %5 = vector.shape_cast %4 : vector<16x32xf32> to vector<2x8x32xf32>
    %6 = arith.truncf %5 : vector<2x8x32xf32> to vector<2x8x32xbf16>
    "tpu.trace_start"() <{level = 10 : i32, message = "bih,bjh->bij"}> : () -> ()
    %cst_4 = arith.constant dense<0.000000e+00> : vector<2x8x8xf32>
    %7 = tpu.matmul %6, %1, %cst_4 {dimension_numbers = #tpu.dot_dimension_numbers<[2], [2], [1], [1], [0, 0, 0, 1, 1, 1], [0], [0]>} : vector<2x8x32xbf16>, vector<2x8x32xbf16>, vector<2x8x8xf32> -> vector<2x8x8xf32>
    "tpu.trace_stop"() : () -> ()
    %8 = tpu.iota {dimensions = array<i32: 0>} : vector<8x8xi32>
    %9 = tpu.iota {dimensions = array<i32: 1>} : vector<8x8xi32>
    %10 = arith.cmpi eq, %8, %9 : vector<8x8xi32>
    %11 = vector.shape_cast %10 : vector<8x8xi1> to vector<1x8x8xi1>
    %cst_5 = arith.constant -1.000000e+09 : f32
    %12 = vector.shape_cast %11 : vector<1x8x8xi1> to vector<1x8x8xi1>
    %13 = vector.broadcast %12 : vector<1x8x8xi1> to vector<2x8x8xi1>
    %14 = vector.broadcast %cst_5 : f32 to vector<2x8x8xf32>
    %15 = arith.select %13, %14, %7 : vector<2x8x8xi1>, vector<2x8x8xf32>
    %cst_6 = arith.constant dense<0xFF800000> : vector<2x8xf32>
    %16 = vector.multi_reduction <maximumf>, %15, %cst_6 [2] : vector<2x8x8xf32> to vector<2x8xf32>
    %17 = vector.shape_cast %16 : vector<2x8xf32> to vector<2x8x1xf32>
    %18 = vector.broadcast %17 : vector<2x8x1xf32> to vector<2x8x8xf32>
    %19 = arith.subf %15, %18 : vector<2x8x8xf32>
    %20 = math.exp %19 : vector<2x8x8xf32>
    %cst_7 = arith.constant dense<0.000000e+00> : vector<2x8xf32>
    %21 = vector.multi_reduction <add>, %20, %cst_7 [2] : vector<2x8x8xf32> to vector<2x8xf32>
    %22 = vector.shape_cast %21 : vector<2x8xf32> to vector<2x8x1xf32>
    %23 = tpu.reciprocal %22 {approx = true} : vector<2x8x1xf32> -> vector<2x8x1xf32>
    %24 = vector.broadcast %23 : vector<2x8x1xf32> to vector<2x8x8xf32>
    %25 = arith.mulf %20, %24 : vector<2x8x8xf32>
    %26 = arith.truncf %25 : vector<2x8x8xf32> to vector<2x8x8xbf16>
    "tpu.trace_start"() <{level = 10 : i32, message = "bij,bjh->bih"}> : () -> ()
    %cst_8 = arith.constant dense<0.000000e+00> : vector<2x8x32xf32>
    %27 = tpu.matmul %26, %1, %cst_8 {dimension_numbers = #tpu.dot_dimension_numbers<[2], [1], [1], [2], [0, 0, 0, 1, 1, 2], [0], [0]>} : vector<2x8x8xbf16>, vector<2x8x32xbf16>, vector<2x8x32xf32> -> vector<2x8x32xf32>
    "tpu.trace_stop"() : () -> ()
    %c0_9 = arith.constant 0 : index
    %c0_10 = arith.constant 0 : index
    %c0_11 = arith.constant 0 : index
    %28 = vector.load %arg3[%c0_9, %c0_10, %c0_11] : memref<2x8x32xf32, #tpu.memory_space<vmem>>, vector<2x8x32xf32>
    tpu.vector_store %arg3[%c0_9, %c0_10, %c0_11], %27 {strides = array<i32>} : memref<2x8x32xf32, #tpu.memory_space<vmem>>, vector<2x8x32xf32>,
    return
  }
  func.func @transform_0(%arg0: i32) -> (i32, i32, i32) {
    %c0_i32 = arith.constant 0 : i32
    %c0_i32_0 = arith.constant 0 : i32
    %c0_i32_1 = arith.constant 0 : i32
    return %arg0, %c0_i32, %c0_i32_0 : i32, i32, i32
  }
  func.func @transform_1(%arg0: i32) -> (i32, i32) {
    %c0_i32 = arith.constant 0 : i32
    %c0_i32_0 = arith.constant 0 : i32
    %c0_i32_1 = arith.constant 0 : i32
    return %c0_i32, %c0_i32_0 : i32, i32
  }
  func.func @transform_2(%arg0: i32) -> (i32, i32, i32) {
    %c0_i32 = arith.constant 0 : i32
    %c0_i32_0 = arith.constant 0 : i32
    %c0_i32_1 = arith.constant 0 : i32
    return %arg0, %c0_i32, %c0_i32_0 : i32, i32, i32
  }
}

</mosaic_0001>

<llo_original>
// kernel: tpu_custom_call.1
$region0: #{tpu_custom_call.1}
  #allocation0 [shape = 'u32[]', space=smem, size = 0x4, offset = 0x4, fixed_abs, tag = 'smem constant byte address 0x4 - core index']
  #allocation1 [shape = 'u32[72,128]{1,0:T(1,128)}', space=vmem, size = 0x9000, scoped, tag = 'internal scratch']
  %s0 = inlined_call_operand.hbm [shape: f32[2,8,32], index: 0, kind: input, shape index: {}]
  %s1 = inlined_call_operand.hbm [shape: bf16[32,32], index: 1, kind: input, shape index: {}]
  %s2 = inlined_call_operand.hbm [shape: f32[2,8,32], index: 2, kind: output, shape index: {}]
  %s3 = sld [smem:[#allocation0]]
  $region26: #{tpu_custom_call.1} parent=0
    _
  %s5 = ssub.s32 1, %s3
  %s6 = scalar_select 0, %s5, %s3
  $region1: #{tpu_custom_call.1} parent=0
    #allocation2 [shape = 'u8[8192]{0}', space=vmem, size = 0x2000, scoped, tag = 'input window, operand 0, single buffered']
    #allocation3 [shape = 's32[1]{0}', space=sflag, size = 0x4, scoped, tag = 'scoped memory for tpu_custom_call.1']
    #allocation4 [shape = 's32[1]{0}', space=sflag, size = 0x4, scoped, tag = 'scoped memory for tpu_custom_call.1']
    #allocation5 [shape = 'u8[8192]{0}', space=vmem, size = 0x2000, scoped, tag = 'input window, operand 1, single buffered']
    #allocation6 [shape = 's32[1]{0}', space=sflag, size = 0x4, scoped, tag = 'scoped memory for tpu_custom_call.1']
    #allocation7 [shape = 'u8[8192]{0}', space=vmem, size = 0x2000, scoped, tag = 'output window, operand 0, single buffered']
    %7 = vsyncpa [#allocation3], 0
    %8 = vsyncpa [#allocation6], 0
    %9 = vsyncpa [#allocation4], 0
    // Predicated region
    $region2: #{tpu_custom_call.1} parent=1 // pred_check
      _
    $region3: #{tpu_custom_call.1} parent=1 // pred_check_branch
      %11 = sbr.rel (0) target = $region5
    $region4: #{tpu_custom_call.1} parent=1 // pred_region
      %13 = vsyncadd [#allocation3], 0
      %s14 = sshll.u32 %s0, 4
      %s15 = int_to_ptr.hbm [resolvable:$true] %s14
      %s16 = sshll.u32 [#allocation2], 4
      %s17 = int_to_ptr.vmem [resolvable:$true] %s16
      %22 = dma.hbm_to_vmem [thread:$0]  %s15, 256, %s17, [#allocation3], 128, 128, 8
    $region5: #{tpu_custom_call.1} parent=1 // pred_fallthru
      _
    // Predicated region
    $region6: #{tpu_custom_call.1} parent=1 // pred_check
      _
    $region7: #{tpu_custom_call.1} parent=1 // pred_check_branch
      %24 = sbr.rel (0) target = $region9
    $region8: #{tpu_custom_call.1} parent=1 // pred_region
      %26 = vsyncadd [#allocation6], 0
      %s27 = sshll.u32 %s1, 4
      %s28 = int_to_ptr.hbm [resolvable:$true] %s27
      %s29 = sshll.u32 [#allocation5], 4
      %s30 = int_to_ptr.vmem [resolvable:$true] %s29
      %35 = dma.hbm_to_vmem [thread:$0]  %s28, 256, %s30, [#allocation6], 64, 64, 4
    $region9: #{tpu_custom_call.1} parent=1 // pred_fallthru
      _
    // Predicated region
    $region10: #{tpu_custom_call.1} parent=1 // pred_check
      _
    $region11: #{tpu_custom_call.1} parent=1 // pred_check_branch
      %37 = sbr.rel (0) target = $region13
    $region12: #{tpu_custom_call.1} parent=1 // pred_region
      %39 = dma.done [#allocation3], 256
    $region13: #{tpu_custom_call.1} parent=1 // pred_fallthru
      _
    // Predicated region
    $region14: #{tpu_custom_call.1} parent=1 // pred_check
      _
    $region15: #{tpu_custom_call.1} parent=1 // pred_check_branch
      %41 = sbr.rel (0) target = $region17
    $region16: #{tpu_custom_call.1} parent=1 // pred_region
      %43 = dma.done [#allocation6], 256
    $region17: #{tpu_custom_call.1} parent=1 // pred_fallthru
      _
    %v45 = vld [vmem:[#allocation2] sm:$0xff]
    %v46 = vld [vmem:[#allocation2 + $0x8] sm:$0xff]
    %v47 = vpack.c.bf16 %v45, %v45
    %v48 = vpack.c.bf16 %v46, %v46
    %v49 = vld [vmem:[#allocation5] sm:$0xf]
    %v50 = vld [vmem:[#allocation5 + $0x4] sm:$0xf]
    %v51 = vld [vmem:[#allocation5 + $0x8] sm:$0xf]
    %v52 = vld [vmem:[#allocation5 + $0xc] sm:$0xf]
    %v55 = vunpack.c.l.b16 %v47
    %v56 = vunpack.c.l.b16 %v48
    %v57 = vpack.c.b16 %v56, %v55
    %v62 = vunpack.c.l.b16 %v49
    %v63 = vunpack.c.l.b16 %v50
    %v64 = vunpack.c.l.b16 %v51
    %v65 = vunpack.c.l.b16 %v52
    %v66 = vpack.c.b16 %v63, %v62
    %v67 = vpack.c.b16 %v65, %v64
    %vm70 = vcmask 261120
    %v72 = vsel %vm70, %v57, 0
    %74 = vmatpush.bf16.msra.mxu0 0
    %75 = vmatpush.bf16.msra.mxu0 0
    %76 = vmatpush.bf16.msra.mxu0 0
    %77 = vmatpush.bf16.msra.mxu0 0
    %78 = vmatpush.bf16.msra.mxu0 0
    %79 = vmatpush.bf16.msra.mxu0 0
    %80 = vmatpush.bf16.msra.mxu0 %v67
    %81 = vmatpush.bf16.msra.mxu0 %v66
    %82 = vmatmul.bf16.gmra.mxu0 %v72
    %v83 = vpop.f32.mrf.mxu0
    %v84 = vadd.f32 0.0, %v83
    %v85 = vpop.f32.mrf.mxu0
    %v86 = vadd.f32 0.0, %v85
    %87 = vdwg.mxu0
    %v88 = vpack.c.bf16 %v84, %v84
    %v89 = vpack.c.bf16 %v86, %v86
    %v91 = vsel %vm70, %v88, 0
    %v94 = vsel %vm70, %v47, 0
    %96 = vmatpush.bf16.xpose.msra.mxu0 0
    %97 = vmatpush.bf16.xpose.msra.mxu0 0
    %98 = vmatpush.bf16.xpose.msra.mxu0 0
    %99 = vmatpush.bf16.xpose.msra.mxu0 0
    %100 = vmatpush.bf16.xpose.msra.mxu0 0
    %101 = vmatpush.bf16.xpose.msra.mxu0 0
    %102 = vmatpush.bf16.xpose.msra.mxu0 0
    %103 = vmatpush.bf16.xpose.msra.mxu0 %v94
    %104 = vmatmul.bf16.gmra.mxu0 %v91
    %v105 = vpop.f32.mrf.mxu0
    %v106 = vadd.f32 0.0, %v105
    %v107 = vpop.f32.mrf.mxu0
    %108 = vdwg.mxu0
    %v110 = vsel %vm70, %v89, 0
    %v113 = vsel %vm70, %v48, 0
    %115 = vmatpush.bf16.xpose.msra.mxu0 0
    %116 = vmatpush.bf16.xpose.msra.mxu0 0
    %117 = vmatpush.bf16.xpose.msra.mxu0 0
    %118 = vmatpush.bf16.xpose.msra.mxu0 0
    %119 = vmatpush.bf16.xpose.msra.mxu0 0
    %120 = vmatpush.bf16.xpose.msra.mxu0 0
    %121 = vmatpush.bf16.xpose.msra.mxu0 0
    %122 = vmatpush.bf16.xpose.msra.mxu0 %v113
    %123 = vmatmul.bf16.gmra.mxu0 %v110
    %v124 = vpop.f32.mrf.mxu0
    %v125 = vadd.f32 0.0, %v124
    %v126 = vpop.f32.mrf.mxu0
    %127 = vdwg.mxu0
    %v128 = vlaneseq
    %v129 = vshrl.u32 %v128, 7
    %v130 = vlaneseq
    %v131 = vand.u32 %v130, 127
    %vm132 = vcmp.eq.s32.totalorder %v129, %v131
    %v133 = vsel %vm132, 1, 0
    %vm134 = vcmp.eq.s32.totalorder %v133, 1
    %v135 = vsel %vm134, -1e+09, %v106
    %v136 = vsel %vm134, -1e+09, %v125
    %vm137 = vcmask 64512
    %v138 = vsel %vm137, %v135, -inf
    %139 = vmax.xlane.f32.xlu0 %v138
    %v140 = vpop.xlane.xlu0 %139
    %v141 = vsel %vm137, %v136, -inf
    %142 = vmax.xlane.f32.xlu0 %v141
    %v143 = vpop.xlane.xlu0 %142
    %v144 = vsub.f32 %v135, %v140
    %v145 = vsub.f32 %v136, %v143
    %v146 = vmul.f32 %v144, 1.442695
    %v147 = vpow.pop %v146
    %v148 = vmul.f32 %v145, 1.442695
    %v149 = vpow.pop %v148
    %v150 = vsel %vm137, %v147, 0.0
    %151 = vadd.xlane.f32.xlu0 %v150
    %v152 = vpop.xlane.xlu0 %151
    %v153 = vsel %vm137, %v149, 0.0
    %154 = vadd.xlane.f32.xlu0 %v153
    %v155 = vpop.xlane.xlu0 %154
    %v156 = vrcp.pop %v152
    %v157 = vrcp.pop %v155
    %v158 = vmul.f32 %v147, %v156
    %v159 = vmul.f32 %v149, %v157
    %v160 = vpack.c.bf16 %v158, %v158
    %v161 = vpack.c.bf16 %v159, %v159
    %v163 = vsel %vm137, %v160, 0
    %vm165 = vcmask 1043456
    %v166 = vsel %vm165, %v47, 0
    %168 = vmatpush.bf16.msra.mxu0 0
    %169 = vmatpush.bf16.msra.mxu0 0
    %170 = vmatpush.bf16.msra.mxu0 0
    %171 = vmatpush.bf16.msra.mxu0 0
    %172 = vmatpush.bf16.msra.mxu0 0
    %173 = vmatpush.bf16.msra.mxu0 0
    %174 = vmatpush.bf16.msra.mxu0 0
    %175 = vmatpush.bf16.msra.mxu0 %v166
    %176 = vmatmul.bf16.gmra.mxu0 %v163
    %v177 = vpop.f32.mrf.mxu0
    %v178 = vadd.f32 0.0, %v177
    %v179 = vpop.f32.mrf.mxu0
    %180 = vdwg.mxu0
    %v182 = vsel %vm137, %v161, 0
    %v184 = vsel %vm165, %v48, 0
    %186 = vmatpush.bf16.msra.mxu0 0
    %187 = vmatpush.bf16.msra.mxu0 0
    %188 = vmatpush.bf16.msra.mxu0 0
    %189 = vmatpush.bf16.msra.mxu0 0
    %190 = vmatpush.bf16.msra.mxu0 0
    %191 = vmatpush.bf16.msra.mxu0 0
    %192 = vmatpush.bf16.msra.mxu0 0
    %193 = vmatpush.bf16.msra.mxu0 %v184
    %194 = vmatmul.bf16.gmra.mxu0 %v182
    %v195 = vpop.f32.mrf.mxu0
    %v196 = vadd.f32 0.0, %v195
    %v197 = vpop.f32.mrf.mxu0
    %198 = vdwg.mxu0
    %199 = vst.msk [vmem:[#allocation7] sm:$0xff] %vm70, %v178
    %200 = vst.msk [vmem:[#allocation7 + $0x8] sm:$0xff] %vm70, %v196
    // Predicated region
    $region18: #{tpu_custom_call.1} parent=1 // pred_check
      _
    $region19: #{tpu_custom_call.1} parent=1 // pred_check_branch
      %202 = sbr.rel (0) target = $region21
    $region20: #{tpu_custom_call.1} parent=1 // pred_region
      %204 = vsyncadd [#allocation4], 0
      %s205 = sshll.u32 [#allocation7], 4
      %s206 = int_to_ptr.vmem [resolvable:$true] %s205
      %s207 = sshll.u32 %s2, 4
      %s208 = int_to_ptr.hbm [resolvable:$true] %s207
      %213 = dma.vmem_to_hbm [thread:$0]  %s206, 256, %s208, [#allocation4], 128, 128, 8
    $region21: #{tpu_custom_call.1} parent=1 // pred_fallthru
      _
    // Predicated region
    $region22: #{tpu_custom_call.1} parent=1 // pred_check
      _
    $region23: #{tpu_custom_call.1} parent=1 // pred_check_branch
      %215 = sbr.rel (0) target = $region25
    $region24: #{tpu_custom_call.1} parent=1 // pred_region
      %217 = dma.done [#allocation4], 256
    $region25: #{tpu_custom_call.1} parent=1 // pred_fallthru
      _
    %218 = vsyncpa [#allocation3], 1
    %219 = vsyncpa [#allocation6], 1
    %220 = vsyncpa [#allocation4], 1

</llo_original>
